<compile_context>
chip_gen: v7x
topology: tpu7x:2x2x1
jax: 0.10.0
libtpu: 0.0.40
codegen_flags: <defaults>
</compile_context>

<pallas_src>
import functools

import jax
import jax.numpy as jnp
from jax import lax
from jax.experimental import pallas as pl
from jax.experimental.pallas import tpu as pltpu


def _parsing_relation_kernel(x_ref, out_ref, *, w, hw, h, nc, block_nc,
                             chunk_rows):
    """x_ref: (block_nc, H*W) tile; out_ref: (1, 8, H*W) resident accumulator."""
    p = pl.program_id(0)
    s = pl.program_id(1)
    steps = pl.num_programs(1)

    @pl.when(s == 0)
    def _init():
        out_ref[...] = jnp.zeros_like(out_ref)

    b = p * steps + s                       # global block id (may overhang nc)
    valid_rows = nc - b * block_nc          # rows of this block that are real
    num_chunks = block_nc // chunk_rows
    shift = hw - w                          # lane j should see lane (j+w)%hw

    def smooth_l1(xc):
        rolled = pltpu.roll(xc, shift=shift, axis=1)   # XLU lane rotate
        d = xc - rolled
        ad = jnp.abs(d)
        m = jnp.minimum(ad, 1.0)
        return m * (ad - 0.5 * m)           # == 0.5*d^2 if |d|<1 else |d|-0.5

    def fold(loss):                         # (chunk_rows, hw) -> (1, 8, hw)
        return loss.reshape(-1, 8, hw).sum(axis=0)[None]

    def full_body(j, carry):
        start = pl.multiple_of(j * chunk_rows, chunk_rows)
        xc = x_ref[pl.ds(start, chunk_rows), :].astype(jnp.float32)
        out_ref[...] += fold(smooth_l1(xc))
        return carry

    @pl.when(valid_rows >= block_nc)        # common case: mask-free fast path
    def _full():
        lax.fori_loop(0, num_chunks, full_body, 0)

    @pl.when(valid_rows < block_nc)         # ragged / overhanging tail block
    def _tail():
        rid0 = lax.broadcasted_iota(jnp.int32, (chunk_rows, hw), 0)

        def tail_body(j, carry):
            start = pl.multiple_of(j * chunk_rows, chunk_rows)
            xc = x_ref[pl.ds(start, chunk_rows), :].astype(jnp.float32)
            loss = smooth_l1(xc)
            keep = (rid0 + j * chunk_rows) < valid_rows
            out_ref[...] += fold(jnp.where(keep, loss, 0.0))
            return carry

        lax.fori_loop(0, num_chunks, tail_body, 0)

    @pl.when(s == steps - 1)
    def _finalize():
        # Zero the w wrap-around columns of the rotation.  The mask is derived
        # by rolling a lane-iota exactly the way the data was rolled, so it is
        # correct regardless of the rotate-direction convention (smooth-L1 is
        # symmetric in the sign of the diff).
        col = lax.broadcasted_iota(jnp.int32, (8, hw), 1)
        col_rolled = pltpu.roll(col, shift=shift, axis=1)
        keep = (col_rolled - col) == w
        if h > 2:
            keep = jnp.logical_or(keep, (col - col_rolled) == w)
        out_ref[...] = jnp.where(keep[None], out_ref[...], 0.0)


def _round_up(x, m):
    return -(-x // m) * m


def _default_num_shards():
    """2 shards on multi-TensorCore chips, 1 on single-TC chips (v5e/v6e)."""
    try:
        kind = jax.devices()[0].device_kind.lower()
    except Exception:
        return 1
    single_tc = any(t in kind for t in ("lite", "v5e", "v6e", "v2", "v3"))
    return 1 if single_tc else 2


def _choose_tiling(nc, hw, itemsize, num_shards):
    """Pick (block_nc, chunk_rows): DMA tile rows and in-kernel temp chunk."""
    chunk_rows = min(512, _round_up(max(nc // max(num_shards, 1), 1), 8))
    chunk_rows = max(chunk_rows, 8)
    # ~12 MiB per pipeline buffer: double-buffered input + chunk temporaries
    # + the tiny output slab stay well inside v7x's 64 MiB physical VMEM.
    budget = 12 * 1024 * 1024
    rows = budget // max(1, hw * itemsize)
    rows = max(chunk_rows, (rows // chunk_rows) * chunk_rows)
    per_shard = _round_up(-(-nc // max(num_shards, 1)), chunk_rows)
    block_nc = max(chunk_rows, min(rows, per_shard))
    return block_nc, chunk_rows


def parsing_relation_loss(logits, *, num_shards=None):
    """logits: (N, C, H, W) float array. Returns scalar smooth-L1 mean."""
    n, c, h, w = logits.shape
    if h < 2:
        raise ValueError("ParsingRelationLoss requires h >= 2")
    nc = n * c
    hw = h * w
    itemsize = jnp.dtype(logits.dtype).itemsize

    if num_shards is None:
        num_shards = _default_num_shards()

    # Free reshape for contiguous NCHW: the fast lane axis becomes H*W.
    x = logits.reshape(nc, hw)

    block_nc, chunk_rows = _choose_tiling(nc, hw, itemsize, num_shards)
    num_blocks = pl.cdiv(nc, block_nc)
    num_shards = max(1, min(num_shards, num_blocks))
    steps = pl.cdiv(num_blocks, num_shards)

    kernel = functools.partial(
        _parsing_relation_kernel,
        w=w, hw=hw, h=h, nc=nc, block_nc=block_nc, chunk_rows=chunk_rows)

    # Overhanging shard-steps clamp to the last real block (the kernel masks
    # their entire contribution), so the DMA window is always in bounds.
    in_map = lambda p, s: (jnp.minimum(p * steps + s, num_blocks - 1), 0)

    partials = pl.pallas_call(
        kernel,
        out_shape=jax.ShapeDtypeStruct((num_shards, 8, hw), jnp.float32),
        grid_spec=pltpu.PrefetchScalarGridSpec(
            num_scalar_prefetch=0,
            grid=(num_shards, steps),
            in_specs=[pl.BlockSpec((block_nc, hw), in_map)],
            out_specs=pl.BlockSpec((1, 8, hw), lambda p, s: (p, 0, 0)),
        ),
        compiler_params=pltpu.CompilerParams(
            dimension_semantics=("parallel", "arbitrary"),
            vmem_limit_bytes=48 * 1024 * 1024,
        ),
        cost_estimate=pl.CostEstimate(
            flops=7 * nc * hw,
            transcendentals=0,
            bytes_accessed=nc * hw * itemsize + num_shards * 8 * hw * 4,
        ),
    )(x)

    count = nc * (h - 1) * w                # == (h-1)*n * c * w elements
    return jnp.sum(partials) / jnp.float32(count)


def _reference(logits):
    """Pure-JAX reference matching the PyTorch module."""
    d = logits[:, :, :-1, :] - logits[:, :, 1:, :]
    ad = jnp.abs(d)
    loss = jnp.where(ad < 1.0, 0.5 * d * d, ad - 0.5)
    return jnp.mean(loss)


if __name__ == "__main__":
    key = jax.random.PRNGKey(0)
    n, c, h, w = 2, 4, 16, 16
    logits = jax.random.normal(key, (n, c, h, w), dtype=jnp.float32)

    out = jax.block_until_ready(parsing_relation_loss(logits))
    ref = _reference(logits)
    assert jnp.allclose(out, ref, atol=1e-5, rtol=1e-5), (out, ref)

    # Ragged N*C (= 15) exercises the in-kernel row-masked tail path (no pad).
    logits2 = jax.random.normal(jax.random.PRNGKey(1), (3, 5, 16, 16),
                                dtype=jnp.float32)
    out2 = jax.block_until_ready(parsing_relation_loss(logits2))
    ref2 = _reference(logits2)
    assert jnp.allclose(out2, ref2, atol=1e-5, rtol=1e-5), (out2, ref2)

    print("KERNEL_OK")
</pallas_src>

<mosaic_0001>
module attributes {stable_mosaic.version = 11 : i64} {
  func.func @_parsing_relation_kernel(%arg0: i32, %arg1: i32, %arg2: memref<8x256xf32, #tpu.memory_space<vmem>>, %arg3: memref<1x8x256xf32, #tpu.memory_space<vmem>>) attributes {dimension_semantics = [#tpu.dimension_semantics<parallel>, #tpu.dimension_semantics<arbitrary>], iteration_bounds = array<i64: 1, 1>, scalar_prefetch = 0 : i64, scratch_operands = 0 : i64, tpu.core_type = #tpu.core_type<tc>, window_params = [{transform_indices = @transform_0, window_bounds = array<i64: 8, 256>}, {transform_indices = @transform_1, window_bounds = array<i64: 1, 8, 256>}]} {
    %c0_i32 = arith.constant 0 : i32
    %0 = arith.cmpi eq, %arg1, %c0_i32 : i32
    %1 = arith.extui %0 : i1 to i32
    %c0_i32_0 = arith.constant 0 : i32
    %2 = arith.cmpi ne, %1, %c0_i32_0 : i32
    scf.if %2 {
      %cst = arith.constant 0.000000e+00 : f32
      %16 = vector.broadcast %cst : f32 to vector<1x8x256xf32>
      %c0 = arith.constant 0 : index
      %c0_8 = arith.constant 0 : index
      %c0_9 = arith.constant 0 : index
      %17 = vector.load %arg3[%c0, %c0_8, %c0_9] : memref<1x8x256xf32, #tpu.memory_space<vmem>>, vector<1x8x256xf32>
      tpu.vector_store %arg3[%c0, %c0_8, %c0_9], %16 {strides = array<i32>} : memref<1x8x256xf32, #tpu.memory_space<vmem>>, vector<1x8x256xf32>,
    } else {
    }
    %c1_i32 = arith.constant 1 : i32
    %3 = arith.muli %arg0, %c1_i32 : i32
    %4 = arith.addi %3, %arg1 : i32
    %c8_i32 = arith.constant 8 : i32
    %5 = arith.muli %4, %c8_i32 : i32
    %c8_i32_1 = arith.constant 8 : i32
    %6 = arith.subi %c8_i32_1, %5 : i32
    %c8_i32_2 = arith.constant 8 : i32
    %7 = arith.cmpi sge, %6, %c8_i32_2 : i32
    %8 = arith.extui %7 : i1 to i32
    %c0_i32_3 = arith.constant 0 : i32
    %9 = arith.cmpi ne, %8, %c0_i32_3 : i32
    scf.if %9 {
      %c0_i32_8 = arith.constant 0 : i32
      %c8_i32_9 = arith.constant 8 : i32
      %16 = arith.muli %c0_i32_8, %c8_i32_9 : i32
      %17 = tpu.assume_multiple %16, 8 : i32
      %18 = arith.index_cast %17 : i32 to index
      %c0 = arith.constant 0 : index
      %19 = vector.load %arg2[%18, %c0] : memref<8x256xf32, #tpu.memory_space<vmem>>, vector<8x256xf32>
      %c0_10 = arith.constant 0 : index
      %c0_11 = arith.constant 0 : index
      %c0_12 = arith.constant 0 : index
      %20 = vector.load %arg3[%c0_10, %c0_11, %c0_12] : memref<1x8x256xf32, #tpu.memory_space<vmem>>, vector<1x8x256xf32>
      %c240_i32 = arith.constant 240 : i32
      %21 = tpu.dynamic_rotate %19 by %c240_i32 dim 1 : vector<8x256xf32>, i32 -> vector<8x256xf32>
      %22 = arith.subf %19, %21 : vector<8x256xf32>
      %23 = math.absf %22 : vector<8x256xf32>
      %cst = arith.constant 1.000000e+00 : f32
      %24 = vector.broadcast %cst : f32 to vector<8x256xf32>
      %25 = arith.minimumf %23, %24 : vector<8x256xf32>
      %cst_13 = arith.constant 5.000000e-01 : f32
      %26 = vector.broadcast %cst_13 : f32 to vector<8x256xf32>
      %27 = arith.mulf %26, %25 : vector<8x256xf32>
      %28 = arith.subf %23, %27 : vector<8x256xf32>
      %29 = arith.mulf %25, %28 : vector<8x256xf32>
      %30 = vector.shape_cast %29 : vector<8x256xf32> to vector<1x8x256xf32>
      %cst_14 = arith.constant dense<0.000000e+00> : vector<8x256xf32>
      %31 = vector.multi_reduction <add>, %30, %cst_14 [0] : vector<1x8x256xf32> to vector<8x256xf32>
      %32 = vector.shape_cast %31 : vector<8x256xf32> to vector<1x8x256xf32>
      %33 = arith.addf %20, %32 : vector<1x8x256xf32>
      %c0_15 = arith.constant 0 : index
      %c0_16 = arith.constant 0 : index
      %c0_17 = arith.constant 0 : index
      %34 = vector.load %arg3[%c0_15, %c0_16, %c0_17] : memref<1x8x256xf32, #tpu.memory_space<vmem>>, vector<1x8x256xf32>
      tpu.vector_store %arg3[%c0_15, %c0_16, %c0_17], %33 {strides = array<i32>} : memref<1x8x256xf32, #tpu.memory_space<vmem>>, vector<1x8x256xf32>,
      %c1_i32_18 = arith.constant 1 : i32
    } else {
    }
    %c8_i32_4 = arith.constant 8 : i32
    %10 = arith.cmpi slt, %6, %c8_i32_4 : i32
    %11 = arith.extui %10 : i1 to i32
    %c0_i32_5 = arith.constant 0 : i32
    %12 = arith.cmpi ne, %11, %c0_i32_5 : i32
    scf.if %12 {
      %16 = tpu.iota {dimensions = array<i32: 0>} : vector<8x256xi32>
      %c0_i32_8 = arith.constant 0 : i32
      %c8_i32_9 = arith.constant 8 : i32
      %17 = arith.muli %c0_i32_8, %c8_i32_9 : i32
      %18 = tpu.assume_multiple %17, 8 : i32
      %19 = arith.index_cast %18 : i32 to index
      %c0 = arith.constant 0 : index
      %20 = vector.load %arg2[%19, %c0] : memref<8x256xf32, #tpu.memory_space<vmem>>, vector<8x256xf32>
      %c240_i32 = arith.constant 240 : i32
      %21 = tpu.dynamic_rotate %20 by %c240_i32 dim 1 : vector<8x256xf32>, i32 -> vector<8x256xf32>
      %22 = arith.subf %20, %21 : vector<8x256xf32>
      %23 = math.absf %22 : vector<8x256xf32>
      %cst = arith.constant 1.000000e+00 : f32
      %24 = vector.broadcast %cst : f32 to vector<8x256xf32>
      %25 = arith.minimumf %23, %24 : vector<8x256xf32>
      %cst_10 = arith.constant 5.000000e-01 : f32
      %26 = vector.broadcast %cst_10 : f32 to vector<8x256xf32>
      %27 = arith.mulf %26, %25 : vector<8x256xf32>
      %28 = arith.subf %23, %27 : vector<8x256xf32>
      %29 = arith.mulf %25, %28 : vector<8x256xf32>
      %c8_i32_11 = arith.constant 8 : i32
      %30 = arith.muli %c0_i32_8, %c8_i32_11 : i32
      %31 = vector.broadcast %30 : i32 to vector<8x256xi32>
      %32 = arith.addi %16, %31 : vector<8x256xi32>
      %33 = vector.broadcast %6 : i32 to vector<8x256xi32>
      %34 = arith.cmpi slt, %32, %33 : vector<8x256xi32>
      %c0_12 = arith.constant 0 : index
      %c0_13 = arith.constant 0 : index
      %c0_14 = arith.constant 0 : index
      %35 = vector.load %arg3[%c0_12, %c0_13, %c0_14] : memref<1x8x256xf32, #tpu.memory_space<vmem>>, vector<1x8x256xf32>
      %cst_15 = arith.constant 0.000000e+00 : f32
      %36 = vector.broadcast %cst_15 : f32 to vector<8x256xf32>
      %37 = arith.select %34, %29, %36 : vector<8x256xi1>, vector<8x256xf32>
      %38 = vector.shape_cast %37 : vector<8x256xf32> to vector<1x8x256xf32>
      %cst_16 = arith.constant dense<0.000000e+00> : vector<8x256xf32>
      %39 = vector.multi_reduction <add>, %38, %cst_16 [0] : vector<1x8x256xf32> to vector<8x256xf32>
      %40 = vector.shape_cast %39 : vector<8x256xf32> to vector<1x8x256xf32>
      %41 = arith.addf %35, %40 : vector<1x8x256xf32>
      %c0_17 = arith.constant 0 : index
      %c0_18 = arith.constant 0 : index
      %c0_19 = arith.constant 0 : index
      %42 = vector.load %arg3[%c0_17, %c0_18, %c0_19] : memref<1x8x256xf32, #tpu.memory_space<vmem>>, vector<1x8x256xf32>
      tpu.vector_store %arg3[%c0_17, %c0_18, %c0_19], %41 {strides = array<i32>} : memref<1x8x256xf32, #tpu.memory_space<vmem>>, vector<1x8x256xf32>,
      %c1_i32_20 = arith.constant 1 : i32
    } else {
    }
    %c0_i32_6 = arith.constant 0 : i32
    %13 = arith.cmpi eq, %arg1, %c0_i32_6 : i32
    %14 = arith.extui %13 : i1 to i32
    %c0_i32_7 = arith.constant 0 : i32
    %15 = arith.cmpi ne, %14, %c0_i32_7 : i32
    scf.if %15 {
      %16 = tpu.iota {dimensions = array<i32: 1>} : vector<8x256xi32>
      %c240_i32 = arith.constant 240 : i32
      %17 = tpu.dynamic_rotate %16 by %c240_i32 dim 1 : vector<8x256xi32>, i32 -> vector<8x256xi32>
      %18 = arith.subi %17, %16 : vector<8x256xi32>
      %c16_i32 = arith.constant 16 : i32
      %19 = vector.broadcast %c16_i32 : i32 to vector<8x256xi32>
      %20 = arith.cmpi eq, %18, %19 : vector<8x256xi32>
      %21 = arith.subi %16, %17 : vector<8x256xi32>
      %c16_i32_8 = arith.constant 16 : i32
      %22 = vector.broadcast %c16_i32_8 : i32 to vector<8x256xi32>
      %23 = arith.cmpi eq, %21, %22 : vector<8x256xi32>
      %24 = arith.ori %20, %23 : vector<8x256xi1>
      %25 = vector.shape_cast %24 : vector<8x256xi1> to vector<1x8x256xi1>
      %c0 = arith.constant 0 : index
      %c0_9 = arith.constant 0 : index
      %c0_10 = arith.constant 0 : index
      %26 = vector.load %arg3[%c0, %c0_9, %c0_10] : memref<1x8x256xf32, #tpu.memory_space<vmem>>, vector<1x8x256xf32>
      %cst = arith.constant 0.000000e+00 : f32
      %27 = vector.broadcast %cst : f32 to vector<1x8x256xf32>
      %28 = arith.select %25, %26, %27 : vector<1x8x256xi1>, vector<1x8x256xf32>
      %c0_11 = arith.constant 0 : index
      %c0_12 = arith.constant 0 : index
      %c0_13 = arith.constant 0 : index
      %29 = vector.load %arg3[%c0_11, %c0_12, %c0_13] : memref<1x8x256xf32, #tpu.memory_space<vmem>>, vector<1x8x256xf32>
      tpu.vector_store %arg3[%c0_11, %c0_12, %c0_13], %28 {strides = array<i32>} : memref<1x8x256xf32, #tpu.memory_space<vmem>>, vector<1x8x256xf32>,
    } else {
    }
    return
  }
  func.func @transform_0(%arg0: i32, %arg1: i32) -> (i32, i32) {
    %c1_i32 = arith.constant 1 : i32
    %0 = arith.muli %arg0, %c1_i32 : i32
    %1 = arith.addi %0, %arg1 : i32
    %c0_i32 = arith.constant 0 : i32
    %2 = arith.minsi %1, %c0_i32 : i32
    %c0_i32_0 = arith.constant 0 : i32
    %c0_i32_1 = arith.constant 0 : i32
    return %2, %c0_i32_0 : i32, i32
  }
  func.func @transform_1(%arg0: i32, %arg1: i32) -> (i32, i32, i32) {
    %c0_i32 = arith.constant 0 : i32
    %c0_i32_0 = arith.constant 0 : i32
    %c0_i32_1 = arith.constant 0 : i32
    return %arg0, %c0_i32, %c0_i32_0 : i32, i32, i32
  }
}

</mosaic_0001>

<llo_original>
// kernel: tpu_custom_call.1
$region0: #{tpu_custom_call.1}
  #allocation0 [shape = 'u32[]', space=smem, size = 0x4, offset = 0x4, fixed_abs, tag = 'smem constant byte address 0x4 - core index']
  #allocation1 [shape = 'u32[144,128]{1,0:T(1,128)}', space=vmem, size = 0x12000, scoped, tag = 'internal scratch']
  %s0 = inlined_call_operand.hbm [shape: f32[8,256], index: 0, kind: input, shape index: {}]
  %s1 = inlined_call_operand.hbm [shape: f32[1,8,256], index: 1, kind: output, shape index: {}]
  %s2 = sld [smem:[#allocation0]]
  $region34: #{tpu_custom_call.1} parent=0
    _
  %s4 = ssub.s32 1, %s2
  %s5 = scalar_select 0, %s4, %s2
  $region1: #{tpu_custom_call.1} parent=0
    #allocation2 [shape = 'u8[8192]{0}', space=vmem, size = 0x2000, scoped, tag = 'input window, operand 0, single buffered']
    #allocation3 [shape = 's32[1]{0}', space=sflag, size = 0x4, scoped, tag = 'scoped memory for tpu_custom_call.1']
    #allocation4 [shape = 's32[1]{0}', space=sflag, size = 0x4, scoped, tag = 'scoped memory for tpu_custom_call.1']
    #allocation5 [shape = 'u8[8192]{0}', space=vmem, size = 0x2000, scoped, tag = 'output window, operand 0, single buffered']
    %6 = vsyncpa [#allocation3], 0
    %7 = vsyncpa [#allocation4], 0
    // Predicated region
    $region2: #{tpu_custom_call.1} parent=1 // pred_check
      _
    $region3: #{tpu_custom_call.1} parent=1 // pred_check_branch
      %9 = sbr.rel (0) target = $region5
    $region4: #{tpu_custom_call.1} parent=1 // pred_region
      %s10 = sadd.s32 0, 0
      %p11 = scmp.lt.s32.totalorder %s10, 0
      %s12 = scalar_select %p11, %s10, 0
      %s14 = ssub.s32 256, 256
      %15 = vsyncadd [#allocation3], %s14
      %s16 = smul.addr %s12, 2
      %s17 = smul.addr %s16, 128
      %s18 = scalar_lea.hbm %s0, %s17
      %s20 = sshll.u32 [#allocation2], 4
      %s21 = int_to_ptr.vmem [resolvable:$true] %s20
      %23 = dma.hbm_to_vmem [thread:$0]  %s18, 256, %s21, [#allocation3]
    $region5: #{tpu_custom_call.1} parent=1 // pred_fallthru
      _
    // Predicated region
    $region6: #{tpu_custom_call.1} parent=1 // pred_check
      _
    $region7: #{tpu_custom_call.1} parent=1 // pred_check_branch
      %25 = sbr.rel (0) target = $region9
    $region8: #{tpu_custom_call.1} parent=1 // pred_region
      %26 = dma.done [#allocation3], 256
    $region9: #{tpu_custom_call.1} parent=1 // pred_fallthru
      _
    %s27 = sadd.s32 0, 0
    %p28 = scmp.lt.s32.totalorder %s27, 0
    %s29 = scalar_select %p28, %s27, 0
    %p30 = scmp.eq.s32.totalorder 0, 0
    // Predicated region
    $region10: #{tpu_custom_call.1} parent=1 // pred_check
      %p31 = pneg %p30
    $region11: #{tpu_custom_call.1} parent=1 // pred_check_branch
      %33 = sbr.rel (%p31) target = $region13
    $region12: #{tpu_custom_call.1} parent=1 // pred_region
      %34 = vst [vmem:[#allocation5] sm:$0xff] 0.0
      %35 = vst [vmem:[#allocation5 + $0x8] sm:$0xff] 0.0
    $region13: #{tpu_custom_call.1} parent=1 // pred_fallthru
      _
    %s36 = sadd.s32 0, 0
    %s37 = smul.u32 %s36, 8
    %s38 = ssub.s32 8, %s37
    %p39 = scmp.ge.s32.totalorder %s38, 8
    // Predicated region
    $region14: #{tpu_custom_call.1} parent=1 // pred_check
      %p40 = pneg %p39
    $region15: #{tpu_custom_call.1} parent=1 // pred_check_branch
      %42 = sbr.rel (%p40) target = $region17
    $region16: #{tpu_custom_call.1} parent=1 // pred_region
      %s43 = smul.u32 0, 2
      %s44 = smul.addr %s43, 8
      %s45 = scalar_lea.vmem [#allocation2], %s44
      %v46 = vld [vmem:[%s45] sm:$0xff]
      %v47 = vld [vmem:[%s45 + $0x8] sm:$0xff]
      %v48 = vld [vmem:[#allocation5] sm:$0xff]
      %v49 = vld [vmem:[#allocation5 + $0x8] sm:$0xff]
      %50 = vrot.lane.b32.xlu0 %v46, 112
      %v51 = vpop.permute.xlu0 %50
      %52 = vrot.lane.b32.xlu0 %v47, 112
      %v53 = vpop.permute.xlu0 %52
      %v54 = vlaneseq
      %v55 = vand.u32 %v54, 127
      %vm56 = vcmp.lt.s32.totalorder %v55, 112
      %v57 = vsel %vm56, %v51, %v53
      %v58 = vsel %vm56, %v53, %v51
      %v59 = vsub.f32 %v46, %v57
      %v60 = vsub.f32 %v47, %v58
      %v61 = vand.u32 2147483647, %v59
      %v62 = vand.u32 2147483647, %v60
      %v63 = vmin.f32 %v61, 1.0
      %v64 = vmin.f32 %v62, 1.0
      %v65 = vmul.f32 %v63, 0.5
      %v66 = vmul.f32 %v64, 0.5
      %v67 = vsub.f32 %v61, %v65
      %v68 = vsub.f32 %v62, %v66
      %v69 = vmul.f32 %v63, %v67
      %v70 = vmul.f32 %v64, %v68
      %v71 = vadd.f32 %v69, 0.0
      %v72 = vadd.f32 %v70, 0.0
      %v73 = vadd.f32 %v48, %v71
      %v74 = vadd.f32 %v49, %v72
      %75 = vst [vmem:[#allocation5] sm:$0xff] %v73
      %76 = vst [vmem:[#allocation5 + $0x8] sm:$0xff] %v74
    $region17: #{tpu_custom_call.1} parent=1 // pred_fallthru
      _
    %p77 = scmp.lt.s32.totalorder %s38, 8
    // Predicated region
    $region18: #{tpu_custom_call.1} parent=1 // pred_check
      %p78 = pneg %p77
    $region19: #{tpu_custom_call.1} parent=1 // pred_check_branch
      %80 = sbr.rel (%p78) target = $region21
    $region20: #{tpu_custom_call.1} parent=1 // pred_region
      %v81 = vlaneseq
      %v82 = vshrl.u32 %v81, 7
      %s83 = smul.u32 0, 2
      %s84 = smul.addr %s83, 8
      %s85 = scalar_lea.vmem [#allocation2], %s84
      %v86 = vld [vmem:[%s85] sm:$0xff]
      %v87 = vld [vmem:[%s85 + $0x8] sm:$0xff]
      %88 = vrot.lane.b32.xlu0 %v86, 112
      %v89 = vpop.permute.xlu0 %88
      %90 = vrot.lane.b32.xlu0 %v87, 112
      %v91 = vpop.permute.xlu0 %90
      %v92 = vlaneseq
      %v93 = vand.u32 %v92, 127
      %vm94 = vcmp.lt.s32.totalorder %v93, 112
      %v95 = vsel %vm94, %v89, %v91
      %v96 = vsel %vm94, %v91, %v89
      %v97 = vsub.f32 %v86, %v95
      %v98 = vsub.f32 %v87, %v96
      %v99 = vand.u32 2147483647, %v97
      %v100 = vand.u32 2147483647, %v98
      %v101 = vmin.f32 %v99, 1.0
      %v102 = vmin.f32 %v100, 1.0
      %v103 = vmul.f32 %v101, 0.5
      %v104 = vmul.f32 %v102, 0.5
      %v105 = vsub.f32 %v99, %v103
      %v106 = vsub.f32 %v100, %v104
      %v107 = vmul.f32 %v101, %v105
      %v108 = vmul.f32 %v102, %v106
      %v109 = vstv %s38
      %vm110 = vcmp.lt.s32.totalorder %v82, %v109
      %v111 = vld [vmem:[#allocation5] sm:$0xff]
      %v112 = vld [vmem:[#allocation5 + $0x8] sm:$0xff]
      %v113 = vsel %vm110, %v107, 0.0
      %v114 = vsel %vm110, %v108, 0.0
      %v115 = vadd.f32 %v113, 0.0
      %v116 = vadd.f32 %v114, 0.0
      %v117 = vadd.f32 %v111, %v115
      %v118 = vadd.f32 %v112, %v116
      %119 = vst [vmem:[#allocation5] sm:$0xff] %v117
      %120 = vst [vmem:[#allocation5 + $0x8] sm:$0xff] %v118
    $region21: #{tpu_custom_call.1} parent=1 // pred_fallthru
      _
    // Predicated region
    $region22: #{tpu_custom_call.1} parent=1 // pred_check
      %p121 = pneg %p30
    $region23: #{tpu_custom_call.1} parent=1 // pred_check_branch
      %123 = sbr.rel (%p121) target = $region25
    $region24: #{tpu_custom_call.1} parent=1 // pred_region
      %v124 = vlaneseq
      %v125 = vand.u32 %v124, 127
      %v126 = vadd.s32 %v125, 128
      %127 = vrot.lane.b32.xlu0 %v125, 112
      %v128 = vpop.permute.xlu0 %127
      %129 = vrot.lane.b32.xlu0 %v126, 112
      %v130 = vpop.permute.xlu0 %129
      %vm131 = vcmp.lt.s32.totalorder %v125, 112
      %v132 = vsel %vm131, %v128, %v130
      %v133 = vsel %vm131, %v130, %v128
      %v134 = vsub.s32 %v132, %v125
      %v135 = vsub.s32 %v133, %v126
      %vm136 = vcmp.eq.s32.totalorder %v134, 16
      %vm137 = vcmp.eq.s32.totalorder %v135, 16
      %v138 = vsub.s32 %v125, %v132
      %v139 = vsub.s32 %v126, %v133
      %vm140 = vcmp.eq.s32.totalorder %v138, 16
      %vm141 = vcmp.eq.s32.totalorder %v139, 16
      %vm142 = vmor %vm136, %vm140
      %vm143 = vmor %vm137, %vm141
      %v144 = vld [vmem:[#allocation5] sm:$0xff]
      %v145 = vld [vmem:[#allocation5 + $0x8] sm:$0xff]
      %v146 = vsel %vm142, %v144, 0.0
      %v147 = vsel %vm143, %v145, 0.0
      %148 = vst [vmem:[#allocation5] sm:$0xff] %v146
      %149 = vst [vmem:[#allocation5 + $0x8] sm:$0xff] %v147
    $region25: #{tpu_custom_call.1} parent=1 // pred_fallthru
      _
    // Predicated region
    $region26: #{tpu_custom_call.1} parent=1 // pred_check
      _
    $region27: #{tpu_custom_call.1} parent=1 // pred_check_branch
      %151 = sbr.rel (0) target = $region29
    $region28: #{tpu_custom_call.1} parent=1 // pred_region
      %s153 = ssub.s32 256, 256
      %154 = vsyncadd [#allocation4], %s153
      %s156 = sshll.u32 [#allocation5], 4
      %s157 = int_to_ptr.vmem [resolvable:$true] %s156
      %159 = dma.vmem_to_hbm [thread:$0]  %s157, 256, %s1, [#allocation4]
    $region29: #{tpu_custom_call.1} parent=1 // pred_fallthru
      _
    // Predicated region
    $region30: #{tpu_custom_call.1} parent=1 // pred_check
      _
    $region31: #{tpu_custom_call.1} parent=1 // pred_check_branch
      %161 = sbr.rel (0) target = $region33
    $region32: #{tpu_custom_call.1} parent=1 // pred_region
      %162 = dma.done [#allocation4], 256
    $region33: #{tpu_custom_call.1} parent=1 // pred_fallthru
      _
    %163 = vsyncpa [#allocation3], 1
    %164 = vsyncpa [#allocation4], 1

</llo_original>
